<compile_context>
chip_gen: v7x
topology: tpu7x:2x2x1
jax: 0.10.0
libtpu: 0.0.40
codegen_flags: <defaults>
</compile_context>

<pallas_src>
import jax
import jax.numpy as jnp
from jax.experimental import pallas as pl
from jax.experimental.pallas import tpu as pltpu


# ----------------------------- Pallas kernel -------------------------------
def _decoder_kernel(x_ref, w1_ref, b1_ref, w2_ref, b2_ref, o_ref):
    # Fused 1x1-conv MLP: y = relu(x @ W1 + b1) @ W2 + b2, f32 accumulation.
    x = x_ref[...]                                                     # bf16
    h = jnp.dot(x, w1_ref[...], preferred_element_type=jnp.float32)    # f32
    h = jnp.maximum(h + b1_ref[...], 0.0)                              # f32 bias + ReLU
    y = jnp.dot(h.astype(w2_ref.dtype), w2_ref[...],
                preferred_element_type=jnp.float32)
    o_ref[...] = (y + b2_ref[...]).astype(o_ref.dtype)


def _decoder_matmul(x_bf16, w1, b1, w2, b2, *, tile_m):
    M, V = x_bf16.shape
    HID = w1.shape[1]
    OUT = w2.shape[1]
    grid = (pl.cdiv(M, tile_m),)
    return pl.pallas_call(
        _decoder_kernel,
        out_shape=jax.ShapeDtypeStruct((M, OUT), jnp.float32),
        grid=grid,
        in_specs=[
            pl.BlockSpec((tile_m, V), lambda i: (i, 0)),   # x tile (streamed)
            pl.BlockSpec((V, HID), lambda i: (0, 0)),      # W1 (VMEM-resident)
            pl.BlockSpec((1, HID), lambda i: (0, 0)),      # b1
            pl.BlockSpec((HID, OUT), lambda i: (0, 0)),    # W2 (VMEM-resident)
            pl.BlockSpec((1, OUT), lambda i: (0, 0)),      # b2
        ],
        out_specs=pl.BlockSpec((tile_m, OUT), lambda i: (i, 0)),
        compiler_params=pltpu.CompilerParams(
            dimension_semantics=("parallel",),
            vmem_limit_bytes=32 * 1024 * 1024,
        ),
    )(x_bf16, w1, b1, w2, b2)


def _round_up(v, m):
    return ((v + m - 1) // m) * m


# Tile cap chosen so 2x-buffered x/out tiles + the f32 intermediate stay well
# under v5e's 16 MiB default scoped limit and v7x's 64 MiB physical VMEM.
_MAX_TILE_M = 2048


def _choose_tile_m(m):
    return max(8, _round_up(min(_MAX_TILE_M, m), 8))


# ----------------------------- Module wrapper -------------------------------
class DalleVAEPallas:
    """Synthetic-weight stand-in for Dalle_VAE (decoder forward path only)."""

    def __init__(self, image_size, vocab_size=32, hidden=64, seed=0):
        self.image_size = image_size
        self.vocab_size = vocab_size
        self.hidden = hidden
        out_ch = 3 * 8 * 8                    # RGB pixels of an 8x8 patch
        hid_p = max(128, _round_up(hidden, 128))   # lane-dense hidden width
        self.hidden_padded = hid_p

        key = jax.random.PRNGKey(seed)
        k1, k2, k3, k4 = jax.random.split(key, 4)
        s1 = 1.0 / jnp.sqrt(jnp.float32(vocab_size))
        s2 = 1.0 / jnp.sqrt(jnp.float32(hidden))
        # "True" (unpadded) f32 parameters.
        self.w1 = jax.random.normal(k1, (vocab_size, hidden), jnp.float32) * s1
        self.b1 = jax.random.normal(k2, (1, hidden), jnp.float32) * 0.01
        self.w2 = jax.random.normal(k3, (hidden, out_ch), jnp.float32) * s2
        self.b2 = jax.random.normal(k4, (1, out_ch), jnp.float32) * 0.01

        # Zero-padded (hidden -> hid_p) kernel-side parameters; padding is exact
        # (relu(0+0)=0 and zero rows of W2 contribute nothing).
        w1p = jnp.zeros((vocab_size, hid_p), jnp.float32).at[:, :hidden].set(self.w1)
        b1p = jnp.zeros((1, hid_p), jnp.float32).at[:, :hidden].set(self.b1)
        w2p = jnp.zeros((hid_p, out_ch), jnp.float32).at[:hidden, :].set(self.w2)
        self.w1_bf16 = w1p.astype(jnp.bfloat16)
        self.b1_pad = b1p                       # biases stay f32
        self.w2_bf16 = w2p.astype(jnp.bfloat16)

    def forward(self, img_seq_prob, no_process=False):
        img_seq_prob = img_seq_prob.astype(jnp.float32)   # mirrors .float()
        if no_process:
            # Input is already NCHW: (B, C, H8, W8) -> channels-last.
            x = jnp.transpose(img_seq_prob, (0, 2, 3, 1))
            bsz, h8, w8, num_class = x.shape
        else:
            bsz, seq_len, num_class = img_seq_prob.shape
            h8 = w8 = self.image_size // 8
            # .view(B,H8,W8,V).permute(0,3,1,2) -> NCHW; our 1x1-conv decoder
            # consumes channels-last directly (identical math).
            x = img_seq_prob.reshape(bsz, h8, w8, num_class)
        if num_class != self.vocab_size:
            raise ValueError(
                f"channel dim {num_class} != decoder vocab_size {self.vocab_size}")

        M = bsz * h8 * w8
        x_flat = x.reshape(M, num_class).astype(jnp.bfloat16)

        tile_m = _choose_tile_m(M)
        y = _decoder_matmul(x_flat, self.w1_bf16, self.b1_pad,
                            self.w2_bf16, self.b2, tile_m=tile_m)   # (M, 192) f32

        # Depth-to-space x8: (B,H8,W8,3,8,8) -> (B,3,H,W) NCHW.
        # TODO(synk): fold this into the kernel's output block once Mosaic
        # supports the required sublane<->lane relayout.
        y = y.reshape(bsz, h8, w8, 3, 8, 8)
        y = jnp.transpose(y, (0, 3, 1, 4, 2, 5))
        return y.reshape(bsz, 3, h8 * 8, w8 * 8).astype(jnp.float32)


# ----------------------------- reference check ------------------------------
def _forward_ref(module: DalleVAEPallas, img_seq_prob):
    """Pure-JAX reference using the same bf16-cast operands / f32 accumulation."""
    bsz, seq_len, num_class = img_seq_prob.shape
    h8 = w8 = module.image_size // 8
    x = img_seq_prob.astype(jnp.float32).reshape(bsz * h8 * w8, num_class)
    x = x.astype(jnp.bfloat16)
    h = jnp.dot(x, module.w1_bf16, preferred_element_type=jnp.float32) + module.b1_pad
    h = jnp.maximum(h, 0.0)
    y = jnp.dot(h.astype(jnp.bfloat16), module.w2_bf16,
                preferred_element_type=jnp.float32) + module.b2
    y = y.reshape(bsz, h8, w8, 3, 8, 8)
    return jnp.transpose(y, (0, 3, 1, 4, 2, 5)).reshape(bsz, 3, h8 * 8, w8 * 8)


if __name__ == "__main__":
    image_size = 16          # latent grid 2x2 -> seq_len = 4
    vocab_size = 32
    hidden = 64
    bsz = 2
    seq_len = (image_size // 8) ** 2

    key = jax.random.PRNGKey(0)
    logits = jax.random.normal(key, (bsz, seq_len, vocab_size), jnp.float32)
    img_seq_prob = jax.nn.softmax(logits, axis=-1)   # per-position class probs

    vae = DalleVAEPallas(image_size, vocab_size=vocab_size, hidden=hidden, seed=0)

    out = jax.block_until_ready(vae.forward(img_seq_prob))
    assert out.shape == (bsz, 3, image_size, image_size), out.shape
    assert out.dtype == jnp.float32

    ref = _forward_ref(vae, img_seq_prob)
    err = float(jnp.max(jnp.abs(out - ref)))
    assert jnp.allclose(out, ref, atol=1e-4, rtol=1e-4), err

    # no_process=True branch: decoder consumes an already-NCHW tensor; must
    # reproduce the same image as the main path.
    h8 = image_size // 8
    img_nchw = jnp.transpose(img_seq_prob.reshape(bsz, h8, h8, vocab_size),
                             (0, 3, 1, 2))
    out_np = jax.block_until_ready(vae.forward(img_nchw, no_process=True))
    assert out_np.shape == out.shape
    assert jnp.allclose(out_np, out, atol=1e-5, rtol=1e-5)

    print("KERNEL_OK")
</pallas_src>

<mosaic_0001>
module attributes {stable_mosaic.version = 11 : i64} {
  func.func @_decoder_kernel(%arg0: i32, %arg1: memref<8x32xbf16, #tpu.memory_space<vmem>>, %arg2: memref<32x128xbf16, #tpu.memory_space<vmem>>, %arg3: memref<1x128xf32, #tpu.memory_space<vmem>>, %arg4: memref<128x192xbf16, #tpu.memory_space<vmem>>, %arg5: memref<1x192xf32, #tpu.memory_space<vmem>>, %arg6: memref<8x192xf32, #tpu.memory_space<vmem>>) attributes {dimension_semantics = [#tpu.dimension_semantics<parallel>], iteration_bounds = array<i64: 1>, scalar_prefetch = 0 : i64, scratch_operands = 0 : i64, tpu.core_type = #tpu.core_type<tc>, window_params = [{transform_indices = @transform_0, window_bounds = array<i64: 8, 32>}, {pipeline_mode = #tpu.pipeline_mode<synchronous>, transform_indices = @transform_1, window_bounds = array<i64: 32, 128>}, {pipeline_mode = #tpu.pipeline_mode<synchronous>, transform_indices = @transform_2, window_bounds = array<i64: 1, 128>}, {pipeline_mode = #tpu.pipeline_mode<synchronous>, transform_indices = @transform_3, window_bounds = array<i64: 128, 192>}, {pipeline_mode = #tpu.pipeline_mode<synchronous>, transform_indices = @transform_4, window_bounds = array<i64: 1, 192>}, {transform_indices = @transform_5, window_bounds = array<i64: 8, 192>}]} {
    %c0 = arith.constant 0 : index
    %c0_0 = arith.constant 0 : index
    %0 = vector.load %arg1[%c0, %c0_0] : memref<8x32xbf16, #tpu.memory_space<vmem>>, vector<8x32xbf16>
    %c0_1 = arith.constant 0 : index
    %c0_2 = arith.constant 0 : index
    %1 = vector.load %arg2[%c0_1, %c0_2] : memref<32x128xbf16, #tpu.memory_space<vmem>>, vector<32x128xbf16>
    %cst = arith.constant dense<0.000000e+00> : vector<8x128xf32>
    %2 = tpu.matmul %0, %1, %cst {dimension_numbers = #tpu.dot_dimension_numbers<[1], [0], [0], [1], [0, 0, 1, 1], [], []>} : vector<8x32xbf16>, vector<32x128xbf16>, vector<8x128xf32> -> vector<8x128xf32>
    %c0_3 = arith.constant 0 : index
    %c0_4 = arith.constant 0 : index
    %3 = vector.load %arg3[%c0_3, %c0_4] : memref<1x128xf32, #tpu.memory_space<vmem>>, vector<1x128xf32>
    %4 = vector.broadcast %3 : vector<1x128xf32> to vector<8x128xf32>
    %5 = arith.addf %2, %4 : vector<8x128xf32>
    %cst_5 = arith.constant 0.000000e+00 : f32
    %6 = vector.broadcast %cst_5 : f32 to vector<8x128xf32>
    %7 = arith.maximumf %5, %6 : vector<8x128xf32>
    %8 = arith.truncf %7 : vector<8x128xf32> to vector<8x128xbf16>
    %c0_6 = arith.constant 0 : index
    %c0_7 = arith.constant 0 : index
    %9 = vector.load %arg4[%c0_6, %c0_7] : memref<128x192xbf16, #tpu.memory_space<vmem>>, vector<128x192xbf16>
    %cst_8 = arith.constant dense<0.000000e+00> : vector<8x192xf32>
    %10 = tpu.matmul %8, %9, %cst_8 {dimension_numbers = #tpu.dot_dimension_numbers<[1], [0], [0], [1], [0, 0, 1, 1], [], []>} : vector<8x128xbf16>, vector<128x192xbf16>, vector<8x192xf32> -> vector<8x192xf32>
    %c0_9 = arith.constant 0 : index
    %c0_10 = arith.constant 0 : index
    %11 = vector.load %arg5[%c0_9, %c0_10] : memref<1x192xf32, #tpu.memory_space<vmem>>, vector<1x192xf32>
    %12 = vector.broadcast %11 : vector<1x192xf32> to vector<8x192xf32>
    %13 = arith.addf %10, %12 : vector<8x192xf32>
    %c0_11 = arith.constant 0 : index
    %c0_12 = arith.constant 0 : index
    %14 = vector.load %arg6[%c0_11, %c0_12] : memref<8x192xf32, #tpu.memory_space<vmem>>, vector<8x192xf32>
    tpu.vector_store %arg6[%c0_11, %c0_12], %13 {strides = array<i32>} : memref<8x192xf32, #tpu.memory_space<vmem>>, vector<8x192xf32>,
    return
  }
  func.func @transform_0(%arg0: i32) -> (i32, i32) {
    %c0_i32 = arith.constant 0 : i32
    %c0_i32_0 = arith.constant 0 : i32
    return %arg0, %c0_i32 : i32, i32
  }
  func.func @transform_1(%arg0: i32) -> (i32, i32) {
    %c0_i32 = arith.constant 0 : i32
    %c0_i32_0 = arith.constant 0 : i32
    %c0_i32_1 = arith.constant 0 : i32
    return %c0_i32, %c0_i32_0 : i32, i32
  }
  func.func @transform_2(%arg0: i32) -> (i32, i32) {
    %c0_i32 = arith.constant 0 : i32
    %c0_i32_0 = arith.constant 0 : i32
    %c0_i32_1 = arith.constant 0 : i32
    return %c0_i32, %c0_i32_0 : i32, i32
  }
  func.func @transform_3(%arg0: i32) -> (i32, i32) {
    %c0_i32 = arith.constant 0 : i32
    %c0_i32_0 = arith.constant 0 : i32
    %c0_i32_1 = arith.constant 0 : i32
    return %c0_i32, %c0_i32_0 : i32, i32
  }
  func.func @transform_4(%arg0: i32) -> (i32, i32) {
    %c0_i32 = arith.constant 0 : i32
    %c0_i32_0 = arith.constant 0 : i32
    %c0_i32_1 = arith.constant 0 : i32
    return %c0_i32, %c0_i32_0 : i32, i32
  }
  func.func @transform_5(%arg0: i32) -> (i32, i32) {
    %c0_i32 = arith.constant 0 : i32
    %c0_i32_0 = arith.constant 0 : i32
    return %arg0, %c0_i32 : i32, i32
  }
}

</mosaic_0001>

<llo_original>
// kernel: tpu_custom_call.1
$region0: #{tpu_custom_call.1}
  #allocation0 [shape = 'u32[]', space=smem, size = 0x4, offset = 0x4, fixed_abs, tag = 'smem constant byte address 0x4 - core index']
  #allocation1 [shape = 'u32[144,128]{1,0:T(1,128)}', space=vmem, size = 0x12000, scoped, tag = 'internal scratch']
  %s0 = inlined_call_operand.vmem [shape: bf16[8,32], index: 0, kind: input, shape index: {}]
  %s1 = inlined_call_operand.vmem [shape: bf16[32,128], index: 1, kind: input, shape index: {}]
  %s2 = inlined_call_operand.vmem [shape: f32[1,128], index: 2, kind: input, shape index: {}]
  %s3 = inlined_call_operand.vmem [shape: bf16[128,192], index: 3, kind: input, shape index: {}]
  %s4 = inlined_call_operand.vmem [shape: f32[1,192], index: 4, kind: input, shape index: {}]
  %s5 = inlined_call_operand.hbm [shape: f32[8,192], index: 5, kind: output, shape index: {}]
  %s6 = sld [smem:[#allocation0]]
  $region30: #{tpu_custom_call.1} parent=0
    _
  %s8 = ssub.s32 1, %s6
  %s9 = scalar_select 0, %s8, %s6
  $region1: #{tpu_custom_call.1} parent=0
    #allocation2 [shape = 'u8[8192]{0}', space=vmem, size = 0x2000, scoped, tag = 'output window, operand 0, single buffered']
    #allocation3 [shape = 's32[1]{0}', space=sflag, size = 0x4, scoped, tag = 'scoped memory for tpu_custom_call.1']
    %10 = vsyncpa [#allocation3], 0
    // Predicated region
    $region2: #{tpu_custom_call.1} parent=1 // pred_check
      _
    $region3: #{tpu_custom_call.1} parent=1 // pred_check_branch
      %12 = sbr.rel (0) target = $region5
    $region4: #{tpu_custom_call.1} parent=1 // pred_region
      _
    $region5: #{tpu_custom_call.1} parent=1 // pred_fallthru
      _
    // Predicated region
    $region6: #{tpu_custom_call.1} parent=1 // pred_check
      _
    $region7: #{tpu_custom_call.1} parent=1 // pred_check_branch
      %14 = sbr.rel (0) target = $region9
    $region8: #{tpu_custom_call.1} parent=1 // pred_region
      _
    $region9: #{tpu_custom_call.1} parent=1 // pred_fallthru
      _
    // Predicated region
    $region10: #{tpu_custom_call.1} parent=1 // pred_check
      _
    $region11: #{tpu_custom_call.1} parent=1 // pred_check_branch
      %16 = sbr.rel (0) target = $region13
    $region12: #{tpu_custom_call.1} parent=1 // pred_region
      _
    $region13: #{tpu_custom_call.1} parent=1 // pred_fallthru
      _
    // Predicated region
    $region14: #{tpu_custom_call.1} parent=1 // pred_check
      _
    $region15: #{tpu_custom_call.1} parent=1 // pred_check_branch
      %18 = sbr.rel (0) target = $region17
    $region16: #{tpu_custom_call.1} parent=1 // pred_region
      _
    $region17: #{tpu_custom_call.1} parent=1 // pred_fallthru
      _
    // Predicated region
    $region18: #{tpu_custom_call.1} parent=1 // pred_check
      _
    $region19: #{tpu_custom_call.1} parent=1 // pred_check_branch
      %20 = sbr.rel (0) target = $region21
    $region20: #{tpu_custom_call.1} parent=1 // pred_region
      _
    $region21: #{tpu_custom_call.1} parent=1 // pred_fallthru
      _
    %v22 = vld [vmem:[%s0] sm:$0xf]
    %v23 = vld [vmem:[%s1] sm:$0xf]
    %v24 = vld [vmem:[%s1 + $0x4] sm:$0xf]
    %v25 = vld [vmem:[%s1 + $0x8] sm:$0xf]
    %v26 = vld [vmem:[%s1 + $0xc] sm:$0xf]
    %v27 = vld [vmem:[%s2] sm:$0x1]
    %v29 = vlaneseq
    %v30 = vshrl.u32 %v29, 7
    %v31 = vsub.s32 0, %v30
    %v32 = vrot.slane %v27, %v31
    %v38 = vunpack.c.l.b16 %v23
    %v39 = vunpack.c.l.b16 %v24
    %v40 = vunpack.c.l.b16 %v25
    %v41 = vunpack.c.l.b16 %v26
    %v42 = vpack.c.b16 %v39, %v38
    %v43 = vpack.c.b16 %v41, %v40
    %vm46 = vcmask 261120
    %v48 = vsel %vm46, %v22, 0
    %50 = vmatprep.subr.bf16.mxu0 0
    %51 = vmatpush1.bf16.msra.mxu0 %v42
    %52 = vmatprep.subr.bf16.mxu0 0
    %53 = vmatpush1.bf16.msra.mxu0 %v43
    %54 = vmatprep.subr.bf16.mxu0 0
    %55 = vmatpush1.bf16.msra.mxu0 0
    %56 = vmatprep.subr.bf16.mxu0 0
    %57 = vmatpush1.bf16.msra.mxu0 0
    %58 = vmatprep.subr.bf16.mxu0 0
    %59 = vmatpush1.bf16.msra.mxu0 0
    %60 = vmatprep.subr.bf16.mxu0 0
    %61 = vmatpush1.bf16.msra.mxu0 0
    %62 = vmatprep.subr.bf16.mxu0 0
    %63 = vmatpush1.bf16.msra.mxu0 0
    %64 = vmatprep.subr.bf16.mxu0 0
    %65 = vmatpush1.bf16.msra.mxu0 0
    %66 = vmatprep.subr.bf16.mxu0 0
    %67 = vmatpush1.bf16.msra.mxu0 0
    %68 = vmatprep.subr.bf16.mxu0 0
    %69 = vmatpush1.bf16.msra.mxu0 0
    %70 = vmatprep.subr.bf16.mxu0 0
    %71 = vmatpush1.bf16.msra.mxu0 0
    %72 = vmatprep.subr.bf16.mxu0 0
    %73 = vmatpush1.bf16.msra.mxu0 0
    %74 = vmatprep.subr.bf16.mxu0 0
    %75 = vmatpush1.bf16.msra.mxu0 0
    %76 = vmatprep.subr.bf16.mxu0 0
    %77 = vmatpush1.bf16.msra.mxu0 0
    %78 = vmatprep.subr.bf16.mxu0 0
    %79 = vmatpush1.bf16.msra.mxu0 0
    %80 = vmatprep.subr.bf16.mxu0 0
    %81 = vmatpush1.bf16.msra.mxu0 0
    %82 = vmatprep.mubr.bf16.mxu0 0
    %83 = vmatmul.mubr.bf16.gmra.mrb[0].mxu0 %v48
    %v84 = vpop.f32.mrb[0].mxu0
    %v85 = vadd.f32 %v32, %v84
    %v86 = vpop.f32.mrb[0].mxu0
    %v87 = vpop.f32.mrb[0].mxu0
    %v88 = vpop.f32.mrb[0].mxu0
    %89 = vdwg.mxu0
    %v90 = vmax.f32 %v85, 0.0
    %v91 = vpack.c.bf16 %v90, %v90
    %v92 = vld [vmem:[%s3] sm:$0xff]
    %v93 = vld [vmem:[%s3 + $0x8] sm:$0xff]
    %v94 = vld [vmem:[%s3 + $0x10] sm:$0xff]
    %v95 = vld [vmem:[%s3 + $0x18] sm:$0xff]
    %v96 = vld [vmem:[%s3 + $0x20] sm:$0xff]
    %v97 = vld [vmem:[%s3 + $0x28] sm:$0xff]
    %v98 = vld [vmem:[%s3 + $0x30] sm:$0xff]
    %v99 = vld [vmem:[%s3 + $0x38] sm:$0xff]
    %v100 = vld [vmem:[%s3 + $0x40] sm:$0xff]
    %v101 = vld [vmem:[%s3 + $0x48] sm:$0xff]
    %v102 = vld [vmem:[%s3 + $0x50] sm:$0xff]
    %v103 = vld [vmem:[%s3 + $0x58] sm:$0xff]
    %v104 = vld [vmem:[%s3 + $0x60] sm:$0xff]
    %v105 = vld [vmem:[%s3 + $0x68] sm:$0xff]
    %v106 = vld [vmem:[%s3 + $0x70] sm:$0xff]
    %v107 = vld [vmem:[%s3 + $0x78] sm:$0xff]
    %v108 = vld [vmem:[%s4] sm:$0x3]
    %v110 = vlaneseq
    %v111 = vshrl.u32 %v110, 7
    %v112 = vsub.s32 0, %v111
    %v113 = vrot.slane %v108, %v112
    %v114 = vlaneseq
    %v115 = vshrl.u32 %v114, 7
    %v116 = vsub.s32 1, %v115
    %v117 = vrot.slane %v108, %v116
    %v136 = vunpack.c.l.b16 %v92
    %v137 = vunpack.c.h.b16 %v92
    %v138 = vunpack.c.l.b16 %v93
    %v139 = vunpack.c.h.b16 %v93
    %v140 = vunpack.c.l.b16 %v94
    %v141 = vunpack.c.h.b16 %v94
    %v142 = vunpack.c.l.b16 %v95
    %v143 = vunpack.c.h.b16 %v95
    %v144 = vunpack.c.l.b16 %v96
    %v145 = vunpack.c.h.b16 %v96
    %v146 = vunpack.c.l.b16 %v97
    %v147 = vunpack.c.h.b16 %v97
    %v148 = vunpack.c.l.b16 %v98
    %v149 = vunpack.c.h.b16 %v98
    %v150 = vunpack.c.l.b16 %v99
    %v151 = vunpack.c.h.b16 %v99
    %v152 = vunpack.c.l.b16 %v100
    %v153 = vunpack.c.h.b16 %v100
    %v154 = vunpack.c.l.b16 %v101
    %v155 = vunpack.c.h.b16 %v101
    %v156 = vunpack.c.l.b16 %v102
    %v157 = vunpack.c.h.b16 %v102
    %v158 = vunpack.c.l.b16 %v103
    %v159 = vunpack.c.h.b16 %v103
    %v160 = vunpack.c.l.b16 %v104
    %v161 = vunpack.c.h.b16 %v104
    %v162 = vunpack.c.l.b16 %v105
    %v163 = vunpack.c.h.b16 %v105
    %v164 = vunpack.c.l.b16 %v106
    %v165 = vunpack.c.h.b16 %v106
    %v166 = vunpack.c.l.b16 %v107
    %v167 = vunpack.c.h.b16 %v107
    %v168 = vpack.c.b16 %v138, %v136
    %v169 = vpack.c.b16 %v139, %v137
    %v170 = vpack.c.b16 %v142, %v140
    %v171 = vpack.c.b16 %v143, %v141
    %v172 = vpack.c.b16 %v146, %v144
    %v173 = vpack.c.b16 %v147, %v145
    %v174 = vpack.c.b16 %v150, %v148
    %v175 = vpack.c.b16 %v151, %v149
    %v176 = vpack.c.b16 %v154, %v152
    %v177 = vpack.c.b16 %v155, %v153
    %v178 = vpack.c.b16 %v158, %v156
    %v179 = vpack.c.b16 %v159, %v157
    %v180 = vpack.c.b16 %v162, %v160
    %v181 = vpack.c.b16 %v163, %v161
    %v182 = vpack.c.b16 %v166, %v164
    %v183 = vpack.c.b16 %v167, %v165
    %200 = vmatprep.subr.bf16.mxu0 %v169
    %201 = vmatpush1.bf16.msra.mxu0 %v168
    %202 = vmatprep.subr.bf16.mxu0 %v171
    %203 = vmatpush1.bf16.msra.mxu0 %v170
    %204 = vmatprep.subr.bf16.mxu0 %v173
    %205 = vmatpush1.bf16.msra.mxu0 %v172
    %206 = vmatprep.subr.bf16.mxu0 %v175
    %207 = vmatpush1.bf16.msra.mxu0 %v174
    %208 = vmatprep.subr.bf16.mxu0 %v177
    %209 = vmatpush1.bf16.msra.mxu0 %v176
    %210 = vmatprep.subr.bf16.mxu0 %v179
    %211 = vmatpush1.bf16.msra.mxu0 %v178
    %212 = vmatprep.subr.bf16.mxu0 %v181
    %213 = vmatpush1.bf16.msra.mxu0 %v180
    %214 = vmatprep.subr.bf16.mxu0 %v183
    %215 = vmatpush1.bf16.msra.mxu0 %v182
    %216 = vmatprep.subr.bf16.mxu0 0
    %217 = vmatpush1.bf16.msra.mxu0 0
    %218 = vmatprep.subr.bf16.mxu0 0
    %219 = vmatpush1.bf16.msra.mxu0 0
    %220 = vmatprep.subr.bf16.mxu0 0
    %221 = vmatpush1.bf16.msra.mxu0 0
    %222 = vmatprep.subr.bf16.mxu0 0
    %223 = vmatpush1.bf16.msra.mxu0 0
    %224 = vmatprep.subr.bf16.mxu0 0
    %225 = vmatpush1.bf16.msra.mxu0 0
    %226 = vmatprep.subr.bf16.mxu0 0
    %227 = vmatpush1.bf16.msra.mxu0 0
    %228 = vmatprep.subr.bf16.mxu0 0
    %229 = vmatpush1.bf16.msra.mxu0 0
    %230 = vmatprep.subr.bf16.mxu0 0
    %231 = vmatpush1.bf16.msra.mxu0 0
    %232 = vmatprep.mubr.bf16.mxu0 0
    %233 = vmatmul.mubr.bf16.gmra.mrb[0].mxu0 %v91
    %v234 = vpop.f32.mrb[0].mxu0
    %v235 = vadd.f32 %v113, %v234
    %v236 = vpop.f32.mrb[0].mxu0
    %v237 = vadd.f32 %v117, %v236
    %v238 = vpop.f32.mrb[0].mxu0
    %v239 = vpop.f32.mrb[0].mxu0
    %240 = vdwg.mxu0
    %241 = vst [vmem:[#allocation2] sm:$0xff] %v235
    %vm242 = vcmask 523264
    %243 = vst.msk [vmem:[#allocation2 + $0x8] sm:$0xff] %vm242, %v237
    // Predicated region
    $region22: #{tpu_custom_call.1} parent=1 // pred_check
      _
    $region23: #{tpu_custom_call.1} parent=1 // pred_check_branch
      %245 = sbr.rel (0) target = $region25
    $region24: #{tpu_custom_call.1} parent=1 // pred_region
      %s247 = ssub.s32 256, 256
      %248 = vsyncadd [#allocation3], %s247
      %s250 = sshll.u32 [#allocation2], 4
      %s251 = int_to_ptr.vmem [resolvable:$true] %s250
      %253 = dma.vmem_to_hbm [thread:$0]  %s251, 256, %s5, [#allocation3]
    $region25: #{tpu_custom_call.1} parent=1 // pred_fallthru
      _
    // Predicated region
    $region26: #{tpu_custom_call.1} parent=1 // pred_check
      _
    $region27: #{tpu_custom_call.1} parent=1 // pred_check_branch
      %255 = sbr.rel (0) target = $region29
    $region28: #{tpu_custom_call.1} parent=1 // pred_region
      %256 = dma.done [#allocation3], 256
    $region29: #{tpu_custom_call.1} parent=1 // pred_fallthru
      _
    %257 = vsyncpa [#allocation3], 1

</llo_original>
